<compile_context>
chip_gen: v7x
topology: tpu7x:2x2x1
jax: 0.10.0
libtpu: 0.0.40
codegen_flags: <defaults>
</compile_context>

<pallas_src>
import functools
import math

import jax
import jax.numpy as jnp
from jax import lax
from jax.experimental import pallas as pl
from jax.experimental.pallas import tpu as pltpu


# ---------------------------------------------------------------------------
# Kernel 1: fused QKV projection.  bf16 MXU operands, f32 accumulation.
# q is pre-scaled by 1/sqrt(head_dim) here (T*d_out multiplies) instead of
# scaling the (H, T, T) score tensor later.
# ---------------------------------------------------------------------------
def _qkv_proj_kernel(x_ref, wq_ref, wk_ref, wv_ref, q_ref, k_ref, v_ref, *, q_scale):
    x = x_ref[0].astype(jnp.bfloat16)              # (tm, d_in)
    wq = wq_ref[...].astype(jnp.bfloat16)          # (d_in, d_out)
    wk = wk_ref[...].astype(jnp.bfloat16)
    wv = wv_ref[...].astype(jnp.bfloat16)

    q = jnp.dot(x, wq, preferred_element_type=jnp.float32)   # (tm, d_out) f32
    k = jnp.dot(x, wk, preferred_element_type=jnp.float32)
    v = jnp.dot(x, wv, preferred_element_type=jnp.float32)

    q_ref[0] = (q * q_scale).astype(q_ref.dtype)   # bf16 out (halves attention DMA)
    k_ref[0] = k.astype(k_ref.dtype)
    v_ref[0] = v.astype(v_ref.dtype)


def _qkv_projection(x, wq, wk, wv, head_dim, tm):
    B, T, d_in = x.shape
    d_out = wq.shape[1]
    q_scale = 1.0 / math.sqrt(head_dim)
    kernel = functools.partial(_qkv_proj_kernel, q_scale=q_scale)
    out_sd = jax.ShapeDtypeStruct((B, T, d_out), jnp.bfloat16)

    return pl.pallas_call(
        kernel,
        out_shape=(out_sd, out_sd, out_sd),
        grid_spec=pltpu.PrefetchScalarGridSpec(
            num_scalar_prefetch=0,
            grid=(B, T // tm),
            in_specs=[
                pl.BlockSpec((1, tm, d_in), lambda b, i: (b, i, 0)),
                pl.BlockSpec((d_in, d_out), lambda b, i: (0, 0)),
                pl.BlockSpec((d_in, d_out), lambda b, i: (0, 0)),
                pl.BlockSpec((d_in, d_out), lambda b, i: (0, 0)),
            ],
            out_specs=[
                pl.BlockSpec((1, tm, d_out), lambda b, i: (b, i, 0)),
                pl.BlockSpec((1, tm, d_out), lambda b, i: (b, i, 0)),
                pl.BlockSpec((1, tm, d_out), lambda b, i: (b, i, 0)),
            ],
        ),
        compiler_params=pltpu.CompilerParams(
            dimension_semantics=("parallel", "parallel"),
        ),
    )(x, wq, wk, wv)


# ---------------------------------------------------------------------------
# Kernel 2: flash attention (online softmax), grid = (B, H, nQ, nKV).
# q/k/v are (B, H, T, head_dim) bf16, already scaled.  Output (B, H, T, head_dim).
# Scratch: running max m, denominator l, accumulator acc (all f32, persist
# across the KV axis because the output block index is constant along it).
# ---------------------------------------------------------------------------
def _flash_attn_kernel(q_ref, k_ref, v_ref, o_ref, m_ref, l_ref, acc_ref):
    qi = pl.program_id(2)
    ki = pl.program_id(3)

    @pl.when(ki == 0)
    def _init():
        m_ref[...] = jnp.full_like(m_ref, -jnp.inf)
        l_ref[...] = jnp.zeros_like(l_ref)
        acc_ref[...] = jnp.zeros_like(acc_ref)

    def attend(apply_causal_mask):
        q = q_ref[0, 0]                            # (tq, hd) bf16, pre-scaled
        k = k_ref[0, 0]                            # (tk, hd) bf16
        v = v_ref[0, 0]                            # (tk, hd) bf16

        # q @ k^T on the MXU, f32 accumulation.
        s = lax.dot_general(q, k, (((1,), (1,)), ((), ())),
                            preferred_element_type=jnp.float32)   # (tq, tk)

        if apply_causal_mask:
            # Only the diagonal tile (ki == qi, tq == tk) needs masking; local
            # indices give the causal structure exactly there.
            tq, tk = s.shape
            row = lax.broadcasted_iota(jnp.int32, (tq, tk), 0)
            col = lax.broadcasted_iota(jnp.int32, (tq, tk), 1)
            s = jnp.where(col <= row, s, -jnp.inf)

        m_prev = m_ref[...]                        # (tq, 1) f32
        m_new = jnp.maximum(m_prev, jnp.max(s, axis=-1, keepdims=True))
        alpha = jnp.exp(m_prev - m_new)            # rescale factor for old state
        p = jnp.exp(s - m_new)                     # (tq, tk) f32

        l_ref[...] = alpha * l_ref[...] + jnp.sum(p, axis=-1, keepdims=True)
        acc_ref[...] = alpha * acc_ref[...] + jnp.dot(
            p.astype(jnp.bfloat16), v, preferred_element_type=jnp.float32)
        m_ref[...] = m_new

    # Fully-masked tiles (ki > qi): skip all compute (causal ~2x win for long T).
    @pl.when(ki < qi)
    def _off_diag():
        attend(apply_causal_mask=False)

    @pl.when(ki == qi)
    def _diag():
        attend(apply_causal_mask=True)
        # Diagonal tile is the last contributing KV tile for this q block.
        # o_ref's block index is constant along ki, so this value persists and
        # is written back to HBM after the last ki step.
        o_ref[0, 0] = (acc_ref[...] *
                       pl.reciprocal(l_ref[...], approx=True)).astype(o_ref.dtype)


def _flash_attention(q, k, v, out_dtype, tq, tk):
    B, H, T, hd = q.shape
    return pl.pallas_call(
        _flash_attn_kernel,
        out_shape=jax.ShapeDtypeStruct((B, H, T, hd), out_dtype),
        grid_spec=pltpu.PrefetchScalarGridSpec(
            num_scalar_prefetch=0,
            grid=(B, H, T // tq, T // tk),
            in_specs=[
                pl.BlockSpec((1, 1, tq, hd), lambda b, h, qi, ki: (b, h, qi, 0)),
                pl.BlockSpec((1, 1, tk, hd), lambda b, h, qi, ki: (b, h, ki, 0)),
                pl.BlockSpec((1, 1, tk, hd), lambda b, h, qi, ki: (b, h, ki, 0)),
            ],
            out_specs=pl.BlockSpec((1, 1, tq, hd), lambda b, h, qi, ki: (b, h, qi, 0)),
            scratch_shapes=[
                pltpu.VMEM((tq, 1), jnp.float32),   # running max m
                pltpu.VMEM((tq, 1), jnp.float32),   # running denominator l
                pltpu.VMEM((tq, hd), jnp.float32),  # output accumulator
            ],
        ),
        # B, H, Q-tiles shard across TensorCores (v7x megacore); KV axis revisits
        # the same output block, hence "arbitrary" and last.
        compiler_params=pltpu.CompilerParams(
            dimension_semantics=("parallel", "parallel", "parallel", "arbitrary"),
        ),
        # NOTE: for large tiles (e.g. tq=tk=512 on v6e, 256 on v7x's 64 MiB VMEM)
        # set pltpu.CompilerParams(vmem_limit_bytes=...) with headroom for the
        # double-buffered q/k/v blocks; defaults are ample at these test shapes.
    )(q, k, v)


def _pick_tile(t):
    # Prefer 256-aligned tiles (v6e/v7x MXU width), fall back to smaller
    # multiples of 8, else the full (small) dimension.
    for cand in (256, 128, 64, 32, 16, 8):
        if t % cand == 0:
            return cand
    return t


def multi_head_attention(x, w_query, w_key, w_value, num_heads):
    """x: (B, T, d_in); w_*: (d_in, d_out) (transposed vs. nn.Linear.weight)."""
    B, T, d_in = x.shape
    d_out = w_query.shape[1]
    assert d_out % num_heads == 0, "d_out must be divisible by num_heads"
    head_dim = d_out // num_heads

    tm = _pick_tile(T)          # row tile for the projection
    tq = tk = _pick_tile(T)     # q / kv tiles for attention (tq == tk)

    # TODO(synk): for head_dim < 128 (e.g. this test's head_dim=8) the score /
    # context matmuls under-fill the MXU; packing several heads per matmul (or
    # padding head_dim to 128) would recover that — not implemented here.
    q, k, v = _qkv_projection(x, w_query, w_key, w_value, head_dim, tm)

    # Head split as XLA layout plumbing (outside the kernels) so every Pallas
    # block keeps a full, (8,128)-tileable last dimension.
    def split_heads(t):
        return t.reshape(B, T, num_heads, head_dim).transpose(0, 2, 1, 3)

    ctx = _flash_attention(split_heads(q), split_heads(k), split_heads(v),
                           x.dtype, tq, tk)            # (B, H, T, head_dim)

    # Merge heads back to (B, T, d_out) — same as .transpose(1,2).view(...) in torch.
    return ctx.transpose(0, 2, 1, 3).reshape(B, T, d_out)


def _reference(x, w_query, w_key, w_value, num_heads):
    # Pure-JAX f32 reference mirroring the PyTorch forward (eval mode, no dropout).
    B, T, d_in = x.shape
    d_out = w_query.shape[1]
    head_dim = d_out // num_heads
    q = (x @ w_query).reshape(B, T, num_heads, head_dim).transpose(0, 2, 1, 3)
    k = (x @ w_key).reshape(B, T, num_heads, head_dim).transpose(0, 2, 1, 3)
    v = (x @ w_value).reshape(B, T, num_heads, head_dim).transpose(0, 2, 1, 3)
    scores = jnp.einsum("bhtd,bhsd->bhts", q, k)
    mask = jnp.triu(jnp.ones((T, T), dtype=bool), k=1)
    scores = jnp.where(mask[None, None], -jnp.inf, scores)
    weights = jax.nn.softmax(scores / math.sqrt(head_dim), axis=-1)
    ctx = jnp.einsum("bhts,bhsd->bhtd", weights, v)
    return ctx.transpose(0, 2, 1, 3).reshape(B, T, d_out)


if __name__ == "__main__":
    B = 2
    context_length = 8   # T
    d_in = 32
    d_out = 32
    num_heads = 4
    dropout = 0.0        # TODO(synk): training-mode dropout on attention weights
                         # is not implemented (identity, i.e. eval mode / p=0).

    key = jax.random.PRNGKey(0)
    kx, kq, kk, kv = jax.random.split(key, 4)

    x = jax.random.normal(kx, (B, context_length, d_in), dtype=jnp.float32)

    # nn.Linear-style init U(-1/sqrt(d_in), 1/sqrt(d_in)), stored as (d_in, d_out)
    # so kernels compute x @ W (== nn.Linear(d_in, d_out, bias=False)).
    bound = 1.0 / math.sqrt(d_in)
    w_query = jax.random.uniform(kq, (d_in, d_out), minval=-bound, maxval=bound,
                                 dtype=jnp.float32)
    w_key = jax.random.uniform(kk, (d_in, d_out), minval=-bound, maxval=bound,
                               dtype=jnp.float32)
    w_value = jax.random.uniform(kv, (d_in, d_out), minval=-bound, maxval=bound,
                                 dtype=jnp.float32)

    out = multi_head_attention(x, w_query, w_key, w_value, num_heads)
    out = jax.block_until_ready(out)

    ref = _reference(x, w_query, w_key, w_value, num_heads)
    assert out.shape == (B, context_length, d_out)
    # Tolerance accounts for bf16 MXU operands + approx reciprocal vs. the f32 reference.
    assert jnp.allclose(out, ref, atol=5e-2, rtol=5e-2), "mismatch vs JAX reference"

    print("KERNEL_OK")
</pallas_src>

<mosaic_0001>
module attributes {stable_mosaic.version = 11 : i64} {
  func.func @_qkv_proj_kernel(%arg0: i32, %arg1: i32, %arg2: memref<1x8x32xf32, #tpu.memory_space<vmem>>, %arg3: memref<32x32xf32, #tpu.memory_space<vmem>>, %arg4: memref<32x32xf32, #tpu.memory_space<vmem>>, %arg5: memref<32x32xf32, #tpu.memory_space<vmem>>, %arg6: memref<1x8x32xbf16, #tpu.memory_space<vmem>>, %arg7: memref<1x8x32xbf16, #tpu.memory_space<vmem>>, %arg8: memref<1x8x32xbf16, #tpu.memory_space<vmem>>) attributes {dimension_semantics = [#tpu.dimension_semantics<parallel>, #tpu.dimension_semantics<parallel>], iteration_bounds = array<i64: 2, 1>, scalar_prefetch = 0 : i64, scratch_operands = 0 : i64, tpu.core_type = #tpu.core_type<tc>, window_params = [{transform_indices = @transform_0, window_bounds = array<i64: 1, 8, 32>}, {pipeline_mode = #tpu.pipeline_mode<synchronous>, transform_indices = @transform_1, window_bounds = array<i64: 32, 32>}, {pipeline_mode = #tpu.pipeline_mode<synchronous>, transform_indices = @transform_2, window_bounds = array<i64: 32, 32>}, {pipeline_mode = #tpu.pipeline_mode<synchronous>, transform_indices = @transform_3, window_bounds = array<i64: 32, 32>}, {transform_indices = @transform_4, window_bounds = array<i64: 1, 8, 32>}, {transform_indices = @transform_5, window_bounds = array<i64: 1, 8, 32>}, {transform_indices = @transform_6, window_bounds = array<i64: 1, 8, 32>}]} {
    %c0 = arith.constant 0 : index
    %c0_0 = arith.constant 0 : index
    %c0_1 = arith.constant 0 : index
    %0 = vector.load %arg2[%c0, %c0_0, %c0_1] : memref<1x8x32xf32, #tpu.memory_space<vmem>>, vector<1x8x32xf32>
    %1 = vector.shape_cast %0 : vector<1x8x32xf32> to vector<8x32xf32>
    %2 = arith.truncf %1 : vector<8x32xf32> to vector<8x32xbf16>
    %c0_2 = arith.constant 0 : index
    %c0_3 = arith.constant 0 : index
    %3 = vector.load %arg3[%c0_2, %c0_3] : memref<32x32xf32, #tpu.memory_space<vmem>>, vector<32x32xf32>
    %4 = arith.truncf %3 : vector<32x32xf32> to vector<32x32xbf16>
    %c0_4 = arith.constant 0 : index
    %c0_5 = arith.constant 0 : index
    %5 = vector.load %arg4[%c0_4, %c0_5] : memref<32x32xf32, #tpu.memory_space<vmem>>, vector<32x32xf32>
    %6 = arith.truncf %5 : vector<32x32xf32> to vector<32x32xbf16>
    %c0_6 = arith.constant 0 : index
    %c0_7 = arith.constant 0 : index
    %7 = vector.load %arg5[%c0_6, %c0_7] : memref<32x32xf32, #tpu.memory_space<vmem>>, vector<32x32xf32>
    %8 = arith.truncf %7 : vector<32x32xf32> to vector<32x32xbf16>
    %cst = arith.constant dense<0.000000e+00> : vector<8x32xf32>
    %9 = tpu.matmul %2, %4, %cst {dimension_numbers = #tpu.dot_dimension_numbers<[1], [0], [0], [1], [0, 0, 1, 1], [], []>} : vector<8x32xbf16>, vector<32x32xbf16>, vector<8x32xf32> -> vector<8x32xf32>
    %cst_8 = arith.constant dense<0.000000e+00> : vector<8x32xf32>
    %10 = tpu.matmul %2, %6, %cst_8 {dimension_numbers = #tpu.dot_dimension_numbers<[1], [0], [0], [1], [0, 0, 1, 1], [], []>} : vector<8x32xbf16>, vector<32x32xbf16>, vector<8x32xf32> -> vector<8x32xf32>
    %cst_9 = arith.constant dense<0.000000e+00> : vector<8x32xf32>
    %11 = tpu.matmul %2, %8, %cst_9 {dimension_numbers = #tpu.dot_dimension_numbers<[1], [0], [0], [1], [0, 0, 1, 1], [], []>} : vector<8x32xbf16>, vector<32x32xbf16>, vector<8x32xf32> -> vector<8x32xf32>
    %cst_10 = arith.constant 0.353553385 : f32
    %12 = vector.broadcast %cst_10 : f32 to vector<8x32xf32>
    %13 = arith.mulf %9, %12 : vector<8x32xf32>
    %14 = arith.truncf %13 : vector<8x32xf32> to vector<8x32xbf16>
    %c0_11 = arith.constant 0 : index
    %c0_12 = arith.constant 0 : index
    %c0_13 = arith.constant 0 : index
    %15 = vector.load %arg6[%c0_11, %c0_12, %c0_13] : memref<1x8x32xbf16, #tpu.memory_space<vmem>>, vector<1x8x32xbf16>
    %16 = vector.shape_cast %15 : vector<1x8x32xbf16> to vector<8x32xbf16>
    %17 = vector.shape_cast %14 : vector<8x32xbf16> to vector<1x8x32xbf16>
    tpu.vector_store %arg6[%c0_11, %c0_12, %c0_13], %17 {strides = array<i32>} : memref<1x8x32xbf16, #tpu.memory_space<vmem>>, vector<1x8x32xbf16>,
    %18 = arith.truncf %10 : vector<8x32xf32> to vector<8x32xbf16>
    %c0_14 = arith.constant 0 : index
    %c0_15 = arith.constant 0 : index
    %c0_16 = arith.constant 0 : index
    %19 = vector.load %arg7[%c0_14, %c0_15, %c0_16] : memref<1x8x32xbf16, #tpu.memory_space<vmem>>, vector<1x8x32xbf16>
    %20 = vector.shape_cast %19 : vector<1x8x32xbf16> to vector<8x32xbf16>
    %21 = vector.shape_cast %18 : vector<8x32xbf16> to vector<1x8x32xbf16>
    tpu.vector_store %arg7[%c0_14, %c0_15, %c0_16], %21 {strides = array<i32>} : memref<1x8x32xbf16, #tpu.memory_space<vmem>>, vector<1x8x32xbf16>,
    %22 = arith.truncf %11 : vector<8x32xf32> to vector<8x32xbf16>
    %c0_17 = arith.constant 0 : index
    %c0_18 = arith.constant 0 : index
    %c0_19 = arith.constant 0 : index
    %23 = vector.load %arg8[%c0_17, %c0_18, %c0_19] : memref<1x8x32xbf16, #tpu.memory_space<vmem>>, vector<1x8x32xbf16>
    %24 = vector.shape_cast %23 : vector<1x8x32xbf16> to vector<8x32xbf16>
    %25 = vector.shape_cast %22 : vector<8x32xbf16> to vector<1x8x32xbf16>
    tpu.vector_store %arg8[%c0_17, %c0_18, %c0_19], %25 {strides = array<i32>} : memref<1x8x32xbf16, #tpu.memory_space<vmem>>, vector<1x8x32xbf16>,
    return
  }
  func.func @transform_0(%arg0: i32, %arg1: i32) -> (i32, i32, i32) {
    %c0_i32 = arith.constant 0 : i32
    %c0_i32_0 = arith.constant 0 : i32
    return %arg0, %arg1, %c0_i32 : i32, i32, i32
  }
  func.func @transform_1(%arg0: i32, %arg1: i32) -> (i32, i32) {
    %c0_i32 = arith.constant 0 : i32
    %c0_i32_0 = arith.constant 0 : i32
    %c0_i32_1 = arith.constant 0 : i32
    return %c0_i32, %c0_i32_0 : i32, i32
  }
  func.func @transform_2(%arg0: i32, %arg1: i32) -> (i32, i32) {
    %c0_i32 = arith.constant 0 : i32
    %c0_i32_0 = arith.constant 0 : i32
    %c0_i32_1 = arith.constant 0 : i32
    return %c0_i32, %c0_i32_0 : i32, i32
  }
  func.func @transform_3(%arg0: i32, %arg1: i32) -> (i32, i32) {
    %c0_i32 = arith.constant 0 : i32
    %c0_i32_0 = arith.constant 0 : i32
    %c0_i32_1 = arith.constant 0 : i32
    return %c0_i32, %c0_i32_0 : i32, i32
  }
  func.func @transform_4(%arg0: i32, %arg1: i32) -> (i32, i32, i32) {
    %c0_i32 = arith.constant 0 : i32
    %c0_i32_0 = arith.constant 0 : i32
    return %arg0, %arg1, %c0_i32 : i32, i32, i32
  }
  func.func @transform_5(%arg0: i32, %arg1: i32) -> (i32, i32, i32) {
    %c0_i32 = arith.constant 0 : i32
    %c0_i32_0 = arith.constant 0 : i32
    return %arg0, %arg1, %c0_i32 : i32, i32, i32
  }
  func.func @transform_6(%arg0: i32, %arg1: i32) -> (i32, i32, i32) {
    %c0_i32 = arith.constant 0 : i32
    %c0_i32_0 = arith.constant 0 : i32
    return %arg0, %arg1, %c0_i32 : i32, i32, i32
  }
}

</mosaic_0001>

<llo_original>
// kernel: tpu_custom_call.1
$region0: #{tpu_custom_call.1}
  #allocation0 [shape = 'u32[]', space=smem, size = 0x4, offset = 0x4, fixed_abs, tag = 'smem constant byte address 0x4 - core index']
  #allocation1 [shape = 'u32[144,128]{1,0:T(1,128)}', space=vmem, size = 0x12000, scoped, tag = 'internal scratch']
  %s0 = inlined_call_operand.hbm [shape: f32[2,8,32], index: 0, kind: input, shape index: {}]
  %s1 = inlined_call_operand.hbm [shape: f32[32,32], index: 1, kind: input, shape index: {}]
  %s2 = inlined_call_operand.hbm [shape: f32[32,32], index: 2, kind: input, shape index: {}]
  %s3 = inlined_call_operand.hbm [shape: f32[32,32], index: 3, kind: input, shape index: {}]
  %s4 = inlined_call_operand.hbm [shape: bf16[2,8,32], index: 4, kind: output, shape index: {0}]
  %s5 = inlined_call_operand.hbm [shape: bf16[2,8,32], index: 5, kind: output, shape index: {1}]
  %s6 = inlined_call_operand.hbm [shape: bf16[2,8,32], index: 6, kind: output, shape index: {2}]
  %7 = xla_tuple %s4, %s5, %s6
  %s8 = sld [smem:[#allocation0]]
  $region81: #{tpu_custom_call.1} parent=0
    _
  %s10 = ssub.s32 1, %s8
  %s11 = scalar_select 0, %s10, %s8
  $region1: #{tpu_custom_call.1} parent=0
    #allocation2 [shape = 'u8[8192]{0}', space=vmem, size = 0x2000, scoped, tag = 'input window, operand 0']
    #allocation3 [shape = 's32[2]{0}', space=sflag, size = 0x8, scoped, tag = 'scoped memory for tpu_custom_call.1']
    #allocation4 [shape = 's32[2]{0}', space=sflag, size = 0x8, scoped, tag = 'scoped memory for tpu_custom_call.1']
    #allocation5 [shape = 'u8[16384]{0}', space=vmem, size = 0x4000, scoped, tag = 'input window, operand 1, single buffered']
    #allocation6 [shape = 's32[1]{0}', space=sflag, size = 0x4, scoped, tag = 'scoped memory for tpu_custom_call.1']
    #allocation7 [shape = 'u8[16384]{0}', space=vmem, size = 0x4000, scoped, tag = 'input window, operand 2, single buffered']
    #allocation8 [shape = 'u8[16384]{0}', space=vmem, size = 0x4000, scoped, tag = 'input window, operand 3, single buffered']
    #allocation9 [shape = 's32[1]{0}', space=sflag, size = 0x4, scoped, tag = 'scoped memory for tpu_custom_call.1']
    #allocation10 [shape = 'u8[4096]{0}', space=vmem, size = 0x1000, scoped, tag = 'output window, operand 0']
    #allocation11 [shape = 'u8[4096]{0}', space=vmem, size = 0x1000, scoped, tag = 'output window, operand 1']
    #allocation12 [shape = 's32[2]{0}', space=sflag, size = 0x8, scoped, tag = 'scoped memory for tpu_custom_call.1']
    #allocation13 [shape = 'u8[4096]{0}', space=vmem, size = 0x1000, scoped, tag = 'output window, operand 2']
    %12 = vsyncpa [#allocation3], 0
    %s13 = scalar_lea.sflag [#allocation3], 1
    %14 = vsyncpa %s13, 0
    %15 = vsyncpa [#allocation6], 0
    %16 = vsyncpa [#allocation9], 0
    %17 = vsyncpa [#allocation4], 0
    %s18 = scalar_lea.sflag [#allocation4], 1
    %19 = vsyncpa %s18, 0
    %20 = vsyncpa [#allocation12], 0
    %s21 = scalar_lea.sflag [#allocation12], 1
    %22 = vsyncpa %s21, 0
    loop: start=0, step=1, limit=4
    $region2: #{tpu_custom_call.1} parent=1 // loop_pre_header
      _
    $region3: #{tpu_custom_call.1} parent=1 // loop_header
      %s24 = sphi 0, %s28
      %p25 = scmp.ge.s32.totalorder %s24, 4
      %s31 = sphi 0, %s43
      %s32 = sphi 0, %s39
      %s33 = sphi 0, %s31
      %s34 = sphi 0, %s32
      %s35 = sphi 0, %s33
      %s36 = sphi 0, %s34
      %s48 = sphi 0, %s50
      %s51 = sphi 0, %s48
      %s52 = sphi 0, %s51
      %s68 = sphi 0, %s52
      %s72 = sphi 0, %s72
      %s74 = sphi 0, %s72
      %s75 = sphi 0, %s74
      %s89 = sphi 0, %s75
      %s93 = sphi 0, %s93
      %s95 = sphi 0, %s93
      %s96 = sphi 0, %s95
      %s110 = sphi 0, %s96
      %s114 = sphi 0, %s114
      %s116 = sphi 0, %s114
      %s117 = sphi 0, %s116
      %s131 = sphi 0, %s117
      %s139 = sphi 0, %s141
      %s142 = sphi 0, %s139
      %s143 = sphi 0, %s142
      %s159 = sphi 0, %s143
      %s167 = sphi 0, %s169
      %s170 = sphi 0, %s167
      %s171 = sphi 0, %s170
      %s187 = sphi 0, %s171
      %s195 = sphi 0, %s197
      %s198 = sphi 0, %s195
      %s199 = sphi 0, %s198
      %s215 = sphi 0, %s199
    $region4: #{tpu_custom_call.1} parent=1 // loop_header_branch
      %27 = sbr.rel (%p25) target = $region8
    $region5: #{tpu_custom_call.1} parent=1 // loop_body
      %s29 = ssub.s32 %s24, 1
      %s30 = ssub.s32 %s24, 2
      %s37 = sadd.s32 1, %s32
      %p38 = scmp.ge.s32.totalorder %s37, 1
      %s39 = scalar_select %p38, 0, %s37
      %s40 = sadd.s32 1, %s31
      %s41 = scalar_select %p38, %s40, %s31
      %p42 = scmp.ge.s32.totalorder %s41, 2
      %s43 = scalar_select %p42, 0, %s41
      %s44 = ssub.s32 %s31, %s43
      %s45 = ssub.s32 %s32, %s39
      %s46 = sor.u32 %s44, %s45
      %p47 = scmp.eq.s32.totalorder %s46, 0
      %s49 = sadd.s32 %s48, 1
      %s50 = scalar_select %p47, %s48, %s49
      %p53 = pneg %p47
      %p54 = scmp.eq.s32.totalorder %s24, 1
      %p55 = por %p53, %p54
      %p56 = scmp.ne.s32.totalorder %s48, %s51
      %p57 = scmp.eq.s32.totalorder %s24, 0
      %p58 = por %p56, %p57
      %p59 = scmp.ne.s32.totalorder %s48, %s51
      %p60 = scmp.eq.s32.totalorder %s29, 1
      %p61 = por %p59, %p60
      %p62 = scmp.ne.s32.totalorder %s51, %s52
      %p63 = scmp.eq.s32.totalorder %s29, 0
      %p64 = por %p62, %p63
      %p65 = scmp.ne.s32.totalorder %s51, %s52
      %p66 = scmp.eq.s32.totalorder %s30, 1
      %p67 = por %p65, %p66
      %p69 = scmp.ne.s32.totalorder %s52, %s68
      %p70 = scmp.eq.s32.totalorder %s30, 0
      %p71 = por %p69, %p70
      %s73 = sadd.s32 %s72, 1
      %p76 = scmp.eq.s32.totalorder %s24, 1
      %p77 = scmp.ne.s32.totalorder %s72, %s74
      %p78 = scmp.eq.s32.totalorder %s24, 0
      %p79 = por %p77, %p78
      %p80 = scmp.ne.s32.totalorder %s72, %s74
      %p81 = scmp.eq.s32.totalorder %s29, 1
      %p82 = por %p80, %p81
      %p83 = scmp.ne.s32.totalorder %s74, %s75
      %p84 = scmp.eq.s32.totalorder %s29, 0
      %p85 = por %p83, %p84
      %p86 = scmp.ne.s32.totalorder %s74, %s75
      %p87 = scmp.eq.s32.totalorder %s30, 1
      %p88 = por %p86, %p87
      %p90 = scmp.ne.s32.totalorder %s75, %s89
      %p91 = scmp.eq.s32.totalorder %s30, 0
      %p92 = por %p90, %p91
      %s94 = sadd.s32 %s93, 1
      %p97 = scmp.eq.s32.totalorder %s24, 1
      %p98 = scmp.ne.s32.totalorder %s93, %s95
      %p99 = scmp.eq.s32.totalorder %s24, 0
      %p100 = por %p98, %p99
      %p101 = scmp.ne.s32.totalorder %s93, %s95
      %p102 = scmp.eq.s32.totalorder %s29, 1
      %p103 = por %p101, %p102
      %p104 = scmp.ne.s32.totalorder %s95, %s96
      %p105 = scmp.eq.s32.totalorder %s29, 0
      %p106 = por %p104, %p105
      %p107 = scmp.ne.s32.totalorder %s95, %s96
      %p108 = scmp.eq.s32.totalorder %s30, 1
      %p109 = por %p107, %p108
      %p111 = scmp.ne.s32.totalorder %s96, %s110
      %p112 = scmp.eq.s32.totalorder %s30, 0
      %p113 = por %p111, %p112
      %s115 = sadd.s32 %s114, 1
      %p118 = scmp.eq.s32.totalorder %s24, 1
      %p119 = scmp.ne.s32.totalorder %s114, %s116
      %p120 = scmp.eq.s32.totalorder %s24, 0
      %p121 = por %p119, %p120
      %p122 = scmp.ne.s32.totalorder %s114, %s116
      %p123 = scmp.eq.s32.totalorder %s29, 1
      %p124 = por %p122, %p123
      %p125 = scmp.ne.s32.totalorder %s116, %s117
      %p126 = scmp.eq.s32.totalorder %s29, 0
      %p127 = por %p125, %p126
      %p128 = scmp.ne.s32.totalorder %s116, %s117
      %p129 = scmp.eq.s32.totalorder %s30, 1
      %p130 = por %p128, %p129
      %p132 = scmp.ne.s32.totalorder %s117, %s131
      %p133 = scmp.eq.s32.totalorder %s30, 0
      %p134 = por %p132, %p133
      %s135 = ssub.s32 %s31, %s43
      %s136 = ssub.s32 %s32, %s39
      %s137 = sor.u32 %s135, %s136
      %p138 = scmp.eq.s32.totalorder %s137, 0
      %s140 = sadd.s32 %s139, 1
      %s141 = scalar_select %p138, %s139, %s140
      %p144 = pneg %p138
      %p145 = scmp.eq.s32.totalorder %s24, 1
      %p146 = por %p144, %p145
      %p147 = scmp.ne.s32.totalorder %s139, %s142
      %p148 = scmp.eq.s32.totalorder %s24, 0
      %p149 = por %p147, %p148
      %p150 = scmp.ne.s32.totalorder %s139, %s142
      %p151 = scmp.eq.s32.totalorder %s29, 1
      %p152 = por %p150, %p151
      %p153 = scmp.ne.s32.totalorder %s142, %s143
      %p154 = scmp.eq.s32.totalorder %s29, 0
      %p155 = por %p153, %p154
      %p156 = scmp.ne.s32.totalorder %s142, %s143
      %p157 = scmp.eq.s32.totalorder %s30, 1
      %p158 = por %p156, %p157
      %p160 = scmp.ne.s32.totalorder %s143, %s159
      %p161 = scmp.eq.s32.totalorder %s30, 0
      %p162 = por %p160, %p161
      %s163 = ssub.s32 %s31, %s43
      %s164 = ssub.s32 %s32, %s39
      %s165 = sor.u32 %s163, %s164
      %p166 = scmp.eq.s32.totalorder %s165, 0
      %s168 = sadd.s32 %s167, 1
      %s169 = scalar_select %p166, %s167, %s168
      %p172 = pneg %p166
      %p173 = scmp.eq.s32.totalorder %s24, 1
      %p174 = por %p172, %p173
      %p175 = scmp.ne.s32.totalorder %s167, %s170
      %p176 = scmp.eq.s32.totalorder %s24, 0
      %p177 = por %p175, %p176
      %p178 = scmp.ne.s32.totalorder %s167, %s170
      %p179 = scmp.eq.s32.totalorder %s29, 1
      %p180 = por %p178, %p179
      %p181 = scmp.ne.s32.totalorder %s170, %s171
      %p182 = scmp.eq.s32.totalorder %s29, 0
      %p183 = por %p181, %p182
      %p184 = scmp.ne.s32.totalorder %s170, %s171
      %p185 = scmp.eq.s32.totalorder %s30, 1
      %p186 = por %p184, %p185
      %p188 = scmp.ne.s32.totalorder %s171, %s187
      %p189 = scmp.eq.s32.totalorder %s30, 0
      %p190 = por %p188, %p189
      %s191 = ssub.s32 %s31, %s43
      %s192 = ssub.s32 %s32, %s39
      %s193 = sor.u32 %s191, %s192
      %p194 = scmp.eq.s32.totalorder %s193, 0
      %s196 = sadd.s32 %s195, 1
      %s197 = scalar_select %p194, %s195, %s196
      %p200 = pneg %p194
      %p201 = scmp.eq.s32.totalorder %s24, 1
      %p202 = por %p200, %p201
      %p203 = scmp.ne.s32.totalorder %s195, %s198
      %p204 = scmp.eq.s32.totalorder %s24, 0
      %p205 = por %p203, %p204
      %p206 = scmp.ne.s32.totalorder %s195, %s198
      %p207 = scmp.eq.s32.totalorder %s29, 1
      %p208 = por %p206, %p207
      %p209 = scmp.ne.s32.totalorder %s198, %s199
      %p210 = scmp.eq.s32.totalorder %s29, 0
      %p211 = por %p209, %p210
      %p212 = scmp.ne.s32.totalorder %s198, %s199
      %p213 = scmp.eq.s32.totalorder %s30, 1
      %p214 = por %p212, %p213
      %p216 = scmp.ne.s32.totalorder %s199, %s215
      %p217 = scmp.eq.s32.totalorder %s30, 0
      %p218 = por %p216, %p217
      %p219 = scmp.le.s32.totalorder 1, %s24
      %p220 = scmp.lt.s32.totalorder %s24, 3
      %p221 = pnand %p219, %p220
      %p222 = pneg %p221
      // Predicated region
      $region9: #{tpu_custom_call.1} parent=5 // pred_check
        _
      $region10: #{tpu_custom_call.1} parent=5 // pred_check_branch
        %224 = sbr.rel (%p221) target = $region12
      $region11: #{tpu_custom_call.1} parent=5 // pred_region
        %s225 = ssub.s32 %s24, 1
        // Predicated region
        $region13: #{tpu_custom_call.1} parent=11 // pred_check
          %p226 = pneg %p85
        $region14: #{tpu_custom_call.1} parent=11 // pred_check_branch
          %228 = sbr.rel (%p226) target = $region16
        $region15: #{tpu_custom_call.1} parent=11 // pred_region
          %s230 = ssub.s32 512, 512
          %231 = vsyncadd [#allocation6], %s230
          %s232 = sshll.u32 [#allocation5], 4
          %s233 = int_to_ptr.vmem [resolvable:$true] %s232
          %238 = dma.hbm_to_vmem [thread:$0]  %s1, 512, %s233, [#allocation6], 128, 128, 8
        $region16: #{tpu_custom_call.1} parent=11 // pred_fallthru
          _
        // Predicated region
        $region17: #{tpu_custom_call.1} parent=11 // pred_check
          %p239 = pneg %p106
        $region18: #{tpu_custom_call.1} parent=11 // pred_check_branch
          %241 = sbr.rel (%p239) target = $region20
        $region19: #{tpu_custom_call.1} parent=11 // pred_region
          %s243 = ssub.s32 512, 512
          %244 = vsyncadd [#allocation6], %s243
          %s245 = sshll.u32 [#allocation7], 4
          %s246 = int_to_ptr.vmem [resolvable:$true] %s245
          %251 = dma.hbm_to_vmem [thread:$0]  %s2, 512, %s246, [#allocation6], 128, 128, 8
        $region20: #{tpu_custom_call.1} parent=11 // pred_fallthru
          _
        // Predicated region
        $region21: #{tpu_custom_call.1} parent=11 // pred_check
          %p252 = pneg %p127
        $region22: #{tpu_custom_call.1} parent=11 // pred_check_branch
          %254 = sbr.rel (%p252) target = $region24
        $region23: #{tpu_custom_call.1} parent=11 // pred_region
          %s256 = ssub.s32 512, 512
          %257 = vsyncadd [#allocation9], %s256
          %s258 = sshll.u32 [#allocation8], 4
          %s259 = int_to_ptr.vmem [resolvable:$true] %s258
          %264 = dma.hbm_to_vmem [thread:$0]  %s3, 512, %s259, [#allocation9], 128, 128, 8
        $region24: #{tpu_custom_call.1} parent=11 // pred_fallthru
          _
      $region12: #{tpu_custom_call.1} parent=5 // pred_fallthru
        _
      %p265 = scmp.lt.s32.totalorder %s24, 2
      // Predicated region
      $region25: #{tpu_custom_call.1} parent=5 // pred_check
        %p266 = pneg %p265
      $region26: #{tpu_custom_call.1} parent=5 // pred_check_branch
        %268 = sbr.rel (%p266) target = $region28
      $region27: #{tpu_custom_call.1} parent=5 // pred_region
        // Predicated region
        $region29: #{tpu_custom_call.1} parent=27 // pred_check
          %p269 = pneg %p58
        $region30: #{tpu_custom_call.1} parent=27 // pred_check_branch
          %271 = sbr.rel (%p269) target = $region32
        $region31: #{tpu_custom_call.1} parent=27 // pred_region
          %s272 = sand.u32 %s48, 1
          %s273 = scalar_lea.sflag [#allocation3], %s272
          %s274 = sand.u32 %s48, 1
          %s275 = smul.addr %s274, 8
          %s276 = scalar_lea.vmem [#allocation2], %s275
          %s278 = ssub.s32 128, 128
          %279 = vsyncadd %s273, %s278
          %s280 = sadd.s32 %s32, %s31
          %s281 = smul.addr %s280, 128
          %s282 = scalar_lea.hbm %s0, %s281
          %s284 = sshll.u32 %s276, 4
          %s285 = int_to_ptr.vmem [resolvable:$true] %s284
          %287 = dma.hbm_to_vmem [thread:$0]  %s282, 128, %s285, %s273
        $region32: #{tpu_custom_call.1} parent=27 // pred_fallthru
          _
      $region28: #{tpu_custom_call.1} parent=5 // pred_fallthru
        _
      %p288 = scmp.le.s32.totalorder 1, %s24
      %p289 = scmp.lt.s32.totalorder %s24, 3
      %p290 = pnand %p288, %p289
      %p291 = pneg %p290
      // Predicated region
      $region33: #{tpu_custom_call.1} parent=5 // pred_check
        _
      $region34: #{tpu_custom_call.1} parent=5 // pred_check_branch
        %293 = sbr.rel (%p290) target = $region36
      $region35: #{tpu_custom_call.1} parent=5 // pred_region
        %s294 = ssub.s32 %s24, 1
        %s295 = sand.u32 %s51, 1
        %s296 = scalar_lea.sflag [#allocation3], %s295
        %s297 = sand.u32 %s51, 1
        %s298 = smul.addr %s297, 8
        %s299 = scalar_lea.vmem [#allocation2], %s298
        // Predicated region
        $region37: #{tpu_custom_call.1} parent=35 // pred_check
          %p300 = pneg %p64
        $region38: #{tpu_custom_call.1} parent=35 // pred_check_branch
          %302 = sbr.rel (%p300) target = $region40
        $region39: #{tpu_custom_call.1} parent=35 // pred_region
          %303 = dma.done %s296, 128
        $region40: #{tpu_custom_call.1} parent=35 // pred_fallthru
          _
        // Predicated region
        $region41: #{tpu_custom_call.1} parent=35 // pred_check
          %p304 = pneg %p85
        $region42: #{tpu_custom_call.1} parent=35 // pred_check_branch
          %306 = sbr.rel (%p304) target = $region44
        $region43: #{tpu_custom_call.1} parent=35 // pred_region
          %307 = dma.done [#allocation6], 512
        $region44: #{tpu_custom_call.1} parent=35 // pred_fallthru
          _
        // Predicated region
        $region45: #{tpu_custom_call.1} parent=35 // pred_check
          %p308 = pneg %p106
        $region46: #{tpu_custom_call.1} parent=35 // pred_check_branch
          %310 = sbr.rel (%p308) target = $region48
        $region47: #{tpu_custom_call.1} parent=35 // pred_region
          %311 = dma.done [#allocation6], 512
        $region48: #{tpu_custom_call.1} parent=35 // pred_fallthru
          _
        // Predicated region
        $region49: #{tpu_custom_call.1} parent=35 // pred_check
          %p312 = pneg %p127
        $region50: #{tpu_custom_call.1} parent=35 // pred_check_branch
          %314 = sbr.rel (%p312) target = $region52
        $region51: #{tpu_custom_call.1} parent=35 // pred_region
          %315 = dma.done [#allocation9], 512
        $region52: #{tpu_custom_call.1} parent=35 // pred_fallthru
          _
        %s316 = sand.u32 %s51, 1
        %s317 = scalar_lea.sflag [#allocation3], %s316
        %s318 = sand.u32 %s51, 1
        %s319 = smul.addr %s318, 8
        %s320 = scalar_lea.vmem [#allocation2], %s319
        %p321 = pneg %p64
        %p322 = pneg %p61
        %p323 = pneg %p85
        %p324 = pneg %p82
        %p325 = pneg %p106
        %p326 = pneg %p103
        %p327 = pneg %p127
        %p328 = pneg %p124
        %p329 = pneg %p155
        %p330 = pneg %p152
        %s331 = sand.u32 %s142, 1
        %s332 = scalar_lea.sflag [#allocation4], %s331
        %s333 = sand.u32 %s142, 1
        %s334 = smul.addr %s333, 4
        %s335 = scalar_lea.vmem [#allocation10], %s334
        %p336 = pneg %p183
        %p337 = pneg %p180
        %s338 = sand.u32 %s29, 1
        %s339 = scalar_lea.sflag [#allocation12], %s338
        %s340 = sand.u32 %s170, 1
        %s341 = smul.addr %s340, 4
        %s342 = scalar_lea.vmem [#allocation11], %s341
        %p343 = pneg %p211
        %p344 = pneg %p208
        %s345 = sand.u32 %s29, 1
        %s346 = scalar_lea.sflag [#allocation12], %s345
        %s347 = sand.u32 %s198, 1
        %s348 = smul.addr %s347, 4
        %s349 = scalar_lea.vmem [#allocation13], %s348
        %v351 = vld [vmem:[%s299] sm:$0xff]
        %v352 = vpack.c.bf16 %v351, %v351
        %v353 = vld [vmem:[#allocation5] sm:$0xff]
        %v354 = vld [vmem:[#allocation5 + $0x8] sm:$0xff]
        %v355 = vld [vmem:[#allocation5 + $0x10] sm:$0xff]
        %v356 = vld [vmem:[#allocation5 + $0x18] sm:$0xff]
        %v357 = vpack.c.bf16 %v354, %v353
        %v358 = vpack.c.bf16 %v356, %v355
        %v359 = vld [vmem:[#allocation7] sm:$0xff]
        %v360 = vld [vmem:[#allocation7 + $0x8] sm:$0xff]
        %v361 = vld [vmem:[#allocation7 + $0x10] sm:$0xff]
        %v362 = vld [vmem:[#allocation7 + $0x18] sm:$0xff]
        %v363 = vpack.c.bf16 %v360, %v359
        %v364 = vpack.c.bf16 %v362, %v361
        %v365 = vld [vmem:[#allocation8] sm:$0xff]
        %v366 = vld [vmem:[#allocation8 + $0x8] sm:$0xff]
        %v367 = vld [vmem:[#allocation8 + $0x10] sm:$0xff]
        %v368 = vld [vmem:[#allocation8 + $0x18] sm:$0xff]
        %v369 = vpack.c.bf16 %v366, %v365
        %v370 = vpack.c.bf16 %v368, %v367
        %vm371 = vcmask 261120
        %v373 = vsel %vm371, %v352, 0
        %375 = vmatprep.subr.bf16.mxu0 0
        %376 = vmatpush1.bf16.msra.mxu0 %v357
        %377 = vmatprep.subr.bf16.mxu0 0
        %378 = vmatpush1.bf16.msra.mxu0 %v358
        %379 = vmatprep.subr.bf16.mxu0 0
        %380 = vmatpush1.bf16.msra.mxu0 0
        %381 = vmatprep.subr.bf16.mxu0 0
        %382 = vmatpush1.bf16.msra.mxu0 0
        %383 = vmatprep.subr.bf16.mxu0 0
        %384 = vmatpush1.bf16.msra.mxu0 0
        %385 = vmatprep.subr.bf16.mxu0 0
        %386 = vmatpush1.bf16.msra.mxu0 0
        %387 = vmatprep.subr.bf16.mxu0 0
        %388 = vmatpush1.bf16.msra.mxu0 0
        %389 = vmatprep.subr.bf16.mxu0 0
        %390 = vmatpush1.bf16.msra.mxu0 0
        %391 = vmatprep.subr.bf16.mxu0 0
        %392 = vmatpush1.bf16.msra.mxu0 0
        %393 = vmatprep.subr.bf16.mxu0 0
        %394 = vmatpush1.bf16.msra.mxu0 0
        %395 = vmatprep.subr.bf16.mxu0 0
        %396 = vmatpush1.bf16.msra.mxu0 0
        %397 = vmatprep.subr.bf16.mxu0 0
        %398 = vmatpush1.bf16.msra.mxu0 0
        %399 = vmatprep.subr.bf16.mxu0 0
        %400 = vmatpush1.bf16.msra.mxu0 0
        %401 = vmatprep.subr.bf16.mxu0 0
        %402 = vmatpush1.bf16.msra.mxu0 0
        %403 = vmatprep.subr.bf16.mxu0 0
        %404 = vmatpush1.bf16.msra.mxu0 0
        %405 = vmatprep.subr.bf16.mxu0 0
        %406 = vmatpush1.bf16.msra.mxu0 0
        %407 = vmatprep.mubr.bf16.mxu0 0
        %408 = vmatmul.mubr.bf16.gmra.mrb[0].mxu0 %v373
        %v409 = vpop.f32.mrb[0].mxu0
        %v410 = vadd.f32 0.0, %v409
        %v411 = vpop.f32.mrb[0].mxu0
        %v412 = vpop.f32.mrb[0].mxu0
        %v413 = vpop.f32.mrb[0].mxu0
        %414 = vdwg.mxu0
        %415 = vmatprep.subr.bf16.mxu0 0
        %416 = vmatpush1.bf16.msra.mxu0 %v363
        %417 = vmatprep.subr.bf16.mxu0 0
        %418 = vmatpush1.bf16.msra.mxu0 %v364
        %419 = vmatprep.subr.bf16.mxu0 0
        %420 = vmatpush1.bf16.msra.mxu0 0
        %421 = vmatprep.subr.bf16.mxu0 0
        %422 = vmatpush1.bf16.msra.mxu0 0
        %423 = vmatprep.subr.bf16.mxu0 0
        %424 = vmatpush1.bf16.msra.mxu0 0
        %425 = vmatprep.subr.bf16.mxu0 0
        %426 = vmatpush1.bf16.msra.mxu0 0
        %427 = vmatprep.subr.bf16.mxu0 0
        %428 = vmatpush1.bf16.msra.mxu0 0
        %429 = vmatprep.subr.bf16.mxu0 0
        %430 = vmatpush1.bf16.msra.mxu0 0
        %431 = vmatprep.subr.bf16.mxu0 0
        %432 = vmatpush1.bf16.msra.mxu0 0
        %433 = vmatprep.subr.bf16.mxu0 0
        %434 = vmatpush1.bf16.msra.mxu0 0
        %435 = vmatprep.subr.bf16.mxu0 0
        %436 = vmatpush1.bf16.msra.mxu0 0
        %437 = vmatprep.subr.bf16.mxu0 0
        %438 = vmatpush1.bf16.msra.mxu0 0
        %439 = vmatprep.subr.bf16.mxu0 0
        %440 = vmatpush1.bf16.msra.mxu0 0
        %441 = vmatprep.subr.bf16.mxu0 0
        %442 = vmatpush1.bf16.msra.mxu0 0
        %443 = vmatprep.subr.bf16.mxu0 0
        %444 = vmatpush1.bf16.msra.mxu0 0
        %445 = vmatprep.subr.bf16.mxu0 0
        %446 = vmatpush1.bf16.msra.mxu0 0
        %447 = vmatprep.mubr.bf16.mxu0 0
        %448 = vmatmul.mubr.bf16.gmra.mrb[0].mxu0 %v373
        %v449 = vpop.f32.mrb[0].mxu0
        %v450 = vadd.f32 0.0, %v449
        %v451 = vpop.f32.mrb[0].mxu0
        %v452 = vpop.f32.mrb[0].mxu0
        %v453 = vpop.f32.mrb[0].mxu0
        %454 = vdwg.mxu0
        %455 = vmatprep.subr.bf16.mxu0 0
        %456 = vmatpush1.bf16.msra.mxu0 %v369
        %457 = vmatprep.subr.bf16.mxu0 0
        %458 = vmatpush1.bf16.msra.mxu0 %v370
        %459 = vmatprep.subr.bf16.mxu0 0
        %460 = vmatpush1.bf16.msra.mxu0 0
        %461 = vmatprep.subr.bf16.mxu0 0
        %462 = vmatpush1.bf16.msra.mxu0 0
        %463 = vmatprep.subr.bf16.mxu0 0
        %464 = vmatpush1.bf16.msra.mxu0 0
        %465 = vmatprep.subr.bf16.mxu0 0
        %466 = vmatpush1.bf16.msra.mxu0 0
        %467 = vmatprep.subr.bf16.mxu0 0
        %468 = vmatpush1.bf16.msra.mxu0 0
        %469 = vmatprep.subr.bf16.mxu0 0
        %470 = vmatpush1.bf16.msra.mxu0 0
        %471 = vmatprep.subr.bf16.mxu0 0
        %472 = vmatpush1.bf16.msra.mxu0 0
        %473 = vmatprep.subr.bf16.mxu0 0
        %474 = vmatpush1.bf16.msra.mxu0 0
        %475 = vmatprep.subr.bf16.mxu0 0
        %476 = vmatpush1.bf16.msra.mxu0 0
        %477 = vmatprep.subr.bf16.mxu0 0
        %478 = vmatpush1.bf16.msra.mxu0 0
        %479 = vmatprep.subr.bf16.mxu0 0
        %480 = vmatpush1.bf16.msra.mxu0 0
        %481 = vmatprep.subr.bf16.mxu0 0
        %482 = vmatpush1.bf16.msra.mxu0 0
        %483 = vmatprep.subr.bf16.mxu0 0
        %484 = vmatpush1.bf16.msra.mxu0 0
        %485 = vmatprep.subr.bf16.mxu0 0
        %486 = vmatpush1.bf16.msra.mxu0 0
        %487 = vmatprep.mubr.bf16.mxu0 0
        %488 = vmatmul.mubr.bf16.gmra.mrb[0].mxu0 %v373
        %v489 = vpop.f32.mrb[0].mxu0
        %v490 = vadd.f32 0.0, %v489
        %v491 = vpop.f32.mrb[0].mxu0
        %v492 = vpop.f32.mrb[0].mxu0
        %v493 = vpop.f32.mrb[0].mxu0
        %494 = vdwg.mxu0
        %v495 = vmul.f32 %v410, 0.35355338
        %v496 = vpack.c.bf16 %v495, %v495
        %vm497 = vcmask 257024
        %498 = vst.msk [vmem:[%s335] sm:$0xf] %vm497, %v496
        %v499 = vpack.c.bf16 %v450, %v450
        %500 = vst.msk [vmem:[%s342] sm:$0xf] %vm497, %v499
        %v501 = vpack.c.bf16 %v490, %v490
        %502 = vst.msk [vmem:[%s349] sm:$0xf] %vm497, %v501
        %s503 = sand.u32 %s142, 1
        %s504 = scalar_lea.sflag [#allocation4], %s503
        %s505 = sand.u32 %s142, 1
        %s506 = smul.addr %s505, 4
        %s507 = scalar_lea.vmem [#allocation10], %s506
        %s508 = sand.u32 %s29, 1
        %s509 = scalar_lea.sflag [#allocation12], %s508
        %s510 = sand.u32 %s170, 1
        %s511 = smul.addr %s510, 4
        %s512 = scalar_lea.vmem [#allocation11], %s511
        %s513 = sand.u32 %s29, 1
        %s514 = scalar_lea.sflag [#allocation12], %s513
        %s515 = sand.u32 %s198, 1
        %s516 = smul.addr %s515, 4
        %s517 = scalar_lea.vmem [#allocation13], %s516
        // Predicated region
        $region53: #{tpu_custom_call.1} parent=35 // pred_check
          %p518 = pneg %p152
        $region54: #{tpu_custom_call.1} parent=35 // pred_check_branch
          %520 = sbr.rel (%p518) target = $region56
        $region55: #{tpu_custom_call.1} parent=35 // pred_region
          %s522 = ssub.s32 64, 64
          %523 = vsyncadd %s504, %s522
          %s524 = sadd.s32 %s34, %s33
          %s525 = smul.addr %s524, 64
          %s526 = scalar_lea.hbm %s4, %s525
          %s528 = sshll.u32 %s507, 4
          %s529 = int_to_ptr.vmem [resolvable:$true] %s528
          %531 = dma.vmem_to_hbm [thread:$0]  %s529, 64, %s526, %s504
        $region56: #{tpu_custom_call.1} parent=35 // pred_fallthru
          _
        // Predicated region
        $region57: #{tpu_custom_call.1} parent=35 // pred_check
          %p532 = pneg %p180
        $region58: #{tpu_custom_call.1} parent=35 // pred_check_branch
          %534 = sbr.rel (%p532) target = $region60
        $region59: #{tpu_custom_call.1} parent=35 // pred_region
          %s536 = ssub.s32 64, 64
          %537 = vsyncadd %s509, %s536
          %s538 = sadd.s32 %s34, %s33
          %s539 = smul.addr %s538, 64
          %s540 = scalar_lea.hbm %s5, %s539
          %s542 = sshll.u32 %s512, 4
          %s543 = int_to_ptr.vmem [resolvable:$true] %s542
          %545 = dma.vmem_to_hbm [thread:$0]  %s543, 64, %s540, %s509
        $region60: #{tpu_custom_call.1} parent=35 // pred_fallthru
          _
        // Predicated region
        $region61: #{tpu_custom_call.1} parent=35 // pred_check
          %p546 = pneg %p208
        $region62: #{tpu_custom_call.1} parent=35 // pred_check_branch
          %548 = sbr.rel (%p546) target = $region64
        $region63: #{tpu_custom_call.1} parent=35 // pred_region
          %s550 = ssub.s32 64, 64
          %551 = vsyncadd %s514, %s550
          %s552 = sadd.s32 %s34, %s33
          %s553 = smul.addr %s552, 64
          %s554 = scalar_lea.hbm %s6, %s553
          %s556 = sshll.u32 %s517, 4
          %s557 = int_to_ptr.vmem [resolvable:$true] %s556
          %559 = dma.vmem_to_hbm [thread:$0]  %s557, 64, %s554, %s514
        $region64: #{tpu_custom_call.1} parent=35 // pred_fallthru
          _
      $region36: #{tpu_custom_call.1} parent=5 // pred_fallthru
        _
      %p560 = scmp.le.s32.totalorder 2, %s24
      // Predicated region
      $region65: #{tpu_custom_call.1} parent=5 // pred_check
        %p561 = pneg %p560
      $region66: #{tpu_custom_call.1} parent=5 // pred_check_branch
        %563 = sbr.rel (%p561) target = $region68
      $region67: #{tpu_custom_call.1} parent=5 // pred_region
        %s564 = ssub.s32 %s24, 2
        // Predicated region
        $region69: #{tpu_custom_call.1} parent=67 // pred_check
          %p565 = pneg %p158
        $region70: #{tpu_custom_call.1} parent=67 // pred_check_branch
          %567 = sbr.rel (%p565) target = $region72
        $region71: #{tpu_custom_call.1} parent=67 // pred_region
          %s568 = sand.u32 %s143, 1
          %s569 = scalar_lea.sflag [#allocation4], %s568
          %s570 = sand.u32 %s143, 1
          %s571 = smul.addr %s570, 4
          %s572 = scalar_lea.vmem [#allocation10], %s571
          %573 = dma.done %s569, 64
        $region72: #{tpu_custom_call.1} parent=67 // pred_fallthru
          _
        // Predicated region
        $region73: #{tpu_custom_call.1} parent=67 // pred_check
          %p574 = pneg %p186
        $region74: #{tpu_custom_call.1} parent=67 // pred_check_branch
          %576 = sbr.rel (%p574) target = $region76
        $region75: #{tpu_custom_call.1} parent=67 // pred_region
          %s577 = sand.u32 %s30, 1
          %s578 = scalar_lea.sflag [#allocation12], %s577
          %s579 = sand.u32 %s171, 1
          %s580 = smul.addr %s579, 4
          %s581 = scalar_lea.vmem [#allocation11], %s580
          %582 = dma.done %s578, 64
        $region76: #{tpu_custom_call.1} parent=67 // pred_fallthru
          _
        // Predicated region
        $region77: #{tpu_custom_call.1} parent=67 // pred_check
          %p583 = pneg %p214
        $region78: #{tpu_custom_call.1} parent=67 // pred_check_branch
          %585 = sbr.rel (%p583) target = $region80
        $region79: #{tpu_custom_call.1} parent=67 // pred_region
          %s586 = sand.u32 %s30, 1
          %s587 = scalar_lea.sflag [#allocation12], %s586
          %s588 = sand.u32 %s199, 1
          %s589 = smul.addr %s588, 4
          %s590 = scalar_lea.vmem [#allocation13], %s589
          %591 = dma.done %s587, 64
        $region80: #{tpu_custom_call.1} parent=67 // pred_fallthru
          _
      $region68: #{tpu_custom_call.1} parent=5 // pred_fallthru
        _
    $region6: #{tpu_custom_call.1} parent=1 // loop_footer
      %s28 = sadd.s32 1, %s24
    $region7: #{tpu_custom_call.1} parent=1 // loop_footer_branch
      %23 = sbr.rel target = $region3
    $region8: #{tpu_custom_call.1} parent=1 // loop_exit
      _
    %592 = vsyncpa [#allocation3], 1
    %s593 = scalar_lea.sflag [#allocation3], 1
    %594 = vsyncpa %s593, 1
    %595 = vsyncpa [#allocation6], 1
    %596 = vsyncpa [#allocation9], 1
    %597 = vsyncpa [#allocation4], 1
    %s598 = scalar_lea.sflag [#allocation4], 1
    %599 = vsyncpa %s598, 1
    %600 = vsyncpa [#allocation12], 1
    %s601 = scalar_lea.sflag [#allocation12], 1
    %602 = vsyncpa %s601, 1

</llo_original>
